<compile_context>
chip_gen: v5e
topology: v5e:2x2
jax: 0.10.0
libtpu: 0.0.40
codegen_flags: <defaults>
</compile_context>

<pallas_src>
import functools

import jax
import jax.numpy as jnp
from jax.experimental import pallas as pl
from jax.experimental.pallas import tpu as pltpu


# ---------------- fused Pallas kernel ----------------

def _make_fused_kernel(N, H, Ho, WCin, WoCout, stride, padding, KH, eps, inv_count):
    """Conv (KH staged full-batch matmuls) + BN batch stats + BN affine + ReLU."""

    def kernel(x_ref, wbig_ref, gamma_ref, beta_ref, g_ref, gt_ref, out_ref, stage_ref):
        # ---- convolution: accumulate KH taps directly in the output-layout buffer.
        out_ref[...] = jnp.zeros_like(out_ref)
        for kh in range(KH):
            # Static valid output-row range for this tap; rows outside read the
            # (implicit) zero height-padding, so they are simply left zero in the stage.
            ho_lo = max(0, -((kh - padding) // stride))
            ho_hi = min(Ho, (H - 1 + padding - kh) // stride + 1)
            if ho_hi <= ho_lo:
                continue
            nrows = ho_hi - ho_lo
            is_partial = (ho_lo > 0) or (ho_hi < Ho)
            if is_partial:
                stage_ref[...] = jnp.zeros_like(stage_ref)
            for n in range(N):
                src = n * H + ho_lo * stride + kh - padding
                dst = n * Ho + ho_lo
                if stride == 1:
                    stage_ref[dst:dst + nrows, :] = x_ref[src:src + nrows, :]
                else:
                    stage_ref[dst:dst + nrows, :] = x_ref[pl.ds(src, nrows, stride=stride), :]
            # One aligned, full-batch MXU dot per kernel-row tap.
            out_ref[...] += jnp.dot(stage_ref[...], wbig_ref[kh],
                                    preferred_element_type=jnp.float32)

        # ---- per-channel batch statistics (column j holds channel j % Cout).
        # G / GT are precomputed one-hot gather / broadcast matrices (exact zeros/ones).
        y = out_ref[...]                                           # (N*Ho, Wo*Cout)
        colsum = jnp.sum(y, axis=0, keepdims=True)                 # (1, Wo*Cout)
        mean_c = jnp.dot(colsum, g_ref[...],
                         preferred_element_type=jnp.float32) * inv_count     # (1, Cout)
        mean_b = jnp.dot(mean_c, gt_ref[...],
                         preferred_element_type=jnp.float32)                 # (1, Wo*Cout)

        # centered second pass over the resident activations
        d = y - mean_b
        sqsum = jnp.sum(d * d, axis=0, keepdims=True)
        var_c = jnp.dot(sqsum, g_ref[...],
                        preferred_element_type=jnp.float32) * inv_count

        scale_c = gamma_ref[...] * jax.lax.rsqrt(var_c + eps)                # (1, Cout)
        scale_b = jnp.dot(scale_c, gt_ref[...], preferred_element_type=jnp.float32)
        shift_b = jnp.dot(beta_ref[...], gt_ref[...], preferred_element_type=jnp.float32)

        # ---- fused BN affine + ReLU, lane-dense store.
        out_ref[...] = jnp.maximum(d * scale_b + shift_b, 0.0)

    return kernel


# ---------------- banded weight (width padding folded in) ----------------

def _banded_weight(conv_w, W, Wo, stride, padding):
    """wbig[kh, w*Cin+ci, wo*Cout+co] = conv_w[co, ci, kh, kw], kw = w - wo*stride + padding,
    zero where the tap falls outside the kernel window (this absorbs the width
    zero-padding, so the kernel reads the UNPADDED input)."""
    Cout, Cin, KH, KW = conv_w.shape
    w_t = jnp.transpose(conv_w, (2, 3, 1, 0))                  # (KH, KW, Cin, Cout)
    r = jnp.arange(W * Cin)
    c = jnp.arange(Wo * Cout)
    w_r, ci_r = r // Cin, r % Cin
    wo_c, co_c = c // Cout, c % Cout
    kw = w_r[:, None] - stride * wo_c[None, :] + padding       # (W*Cin, Wo*Cout)
    valid = (kw >= 0) & (kw < KW)
    kw_idx = jnp.clip(kw, 0, KW - 1)
    wbig = w_t[:, kw_idx, ci_r[:, None], co_c[None, :]]        # (KH, W*Cin, Wo*Cout)
    return jnp.where(valid[None], wbig, 0.0).astype(jnp.float32)


# ---------------- jitted forward ----------------

@functools.partial(jax.jit,
                   static_argnames=("ksize", "stride", "padding", "vmem_limit"))
def _forward(x_nchw, conv_w, gamma, beta, *, ksize, stride, padding, vmem_limit):
    eps = 1e-5
    N, Cin, H, W = x_nchw.shape
    Cout = conv_w.shape[0]
    KH = ksize
    Ho = (H + 2 * padding - ksize) // stride + 1
    Wo = (W + 2 * padding - ksize) // stride + 1
    WCin, WoCout = W * Cin, Wo * Cout

    # NCHW -> NHWC, flatten to (N*H, W*Cin).  No jnp.pad: padding is handled by the
    # banded weight (width) and in-kernel staging (height).
    x2d = jnp.transpose(x_nchw, (0, 2, 3, 1)).astype(jnp.float32).reshape(N * H, WCin)

    wbig = _banded_weight(conv_w.astype(jnp.float32), W, Wo, stride, padding)
    gamma2d = gamma.reshape(1, Cout).astype(jnp.float32)
    beta2d = beta.reshape(1, Cout).astype(jnp.float32)

    # One-hot channel gather / broadcast matrices: built from static shapes only,
    # so they are compile-time constants (no runtime launch, no in-kernel iota work).
    ch = jnp.arange(WoCout) % Cout
    G = (ch[:, None] == jnp.arange(Cout)[None, :]).astype(jnp.float32)   # (Wo*Cout, Cout)
    GT = G.T                                                             # (Cout, Wo*Cout)

    kernel = _make_fused_kernel(N, H, Ho, WCin, WoCout, stride, padding, KH, eps,
                                1.0 / float(N * Ho * Wo))

    out2d = pl.pallas_call(
        kernel,
        out_shape=jax.ShapeDtypeStruct((N * Ho, WoCout), jnp.float32),
        grid=(1,),
        in_specs=[
            pl.BlockSpec((N * H, WCin), lambda i: (0, 0)),
            pl.BlockSpec((KH, WCin, WoCout), lambda i: (0, 0, 0)),
            pl.BlockSpec((1, Cout), lambda i: (0, 0)),
            pl.BlockSpec((1, Cout), lambda i: (0, 0)),
            pl.BlockSpec((WoCout, Cout), lambda i: (0, 0)),
            pl.BlockSpec((Cout, WoCout), lambda i: (0, 0)),
        ],
        out_specs=pl.BlockSpec((N * Ho, WoCout), lambda i: (0, 0)),
        scratch_shapes=[pltpu.VMEM((N * Ho, WCin), jnp.float32)],
        compiler_params=pltpu.CompilerParams(
            dimension_semantics=("arbitrary",),
            vmem_limit_bytes=vmem_limit,
        ),
    )(x2d, wbig, gamma2d, beta2d, G, GT)

    out = out2d.reshape(N, Ho, Wo, Cout)        # same memory order, free reshape
    return jnp.transpose(out, (0, 3, 1, 2))     # back to NCHW to match the module


# ---------------- public wrapper (static, generation-aware budgeting) ----------------

def cnn_model_forward(x_nchw, conv_w, conv_b, gamma, beta, *, ksize, stride, padding):
    # conv_b mirrors the PyTorch module's parameter but is absorbed exactly by
    # training-mode BatchNorm's batch-mean subtraction, so it never enters the kernel.
    del conv_b
    N, Cin, H, W = x_nchw.shape
    Cout = conv_w.shape[0]
    Ho = (H + 2 * padding - ksize) // stride + 1
    Wo = (W + 2 * padding - ksize) // stride + 1

    # Generation-aware single-step VMEM budget (2x input/output for pipelined buffers
    # Pallas may allocate, plus scratch), compared against the chip's real capacity.
    f32 = 4
    in_bytes = f32 * (N * H * W * Cin
                      + ksize * (W * Cin) * (Wo * Cout)
                      + 2 * (Wo * Cout) * Cout
                      + 2 * Cout)
    out_bytes = f32 * N * Ho * Wo * Cout
    scratch_bytes = f32 * N * Ho * W * Cin
    budget = 2 * (in_bytes + out_bytes) + scratch_bytes
    try:
        vmem_cap = pltpu.get_tpu_info().vmem_capacity_bytes   # 64 MiB v7x, 128 MiB v5e/v6e
    except Exception:
        vmem_cap = 64 * 1024 * 1024                           # assume the smallest (v7x)
    assert budget <= vmem_cap // 2, (
        "working set too large for the single-step kernel; tile Wo / images instead")
    # Tight limit (the resident working set is ~150 KiB here) — leaves headroom for
    # compiler scratch and neighboring XLA ops, especially on v7x's 64 MiB VMEM.
    vmem_limit = int(min(max(4 * 1024 * 1024, budget + (1 << 20)), vmem_cap))

    return _forward(x_nchw, conv_w, gamma, beta,
                    ksize=ksize, stride=stride, padding=padding, vmem_limit=vmem_limit)


# ---------------- pure-JAX reference ----------------

def reference_forward(x_nchw, conv_w, conv_b, gamma, beta, stride, padding):
    eps = 1e-5
    y = jax.lax.conv_general_dilated(
        x_nchw, conv_w,
        window_strides=(stride, stride),
        padding=[(padding, padding), (padding, padding)],
        dimension_numbers=("NCHW", "OIHW", "NCHW"),
    ) + conv_b.reshape(1, -1, 1, 1)
    mean = jnp.mean(y, axis=(0, 2, 3), keepdims=True)
    var = jnp.mean((y - mean) ** 2, axis=(0, 2, 3), keepdims=True)
    yn = (y - mean) / jnp.sqrt(var + eps)
    yn = yn * gamma.reshape(1, -1, 1, 1) + beta.reshape(1, -1, 1, 1)
    return jnp.maximum(yn, 0.0)


if __name__ == "__main__":
    # CNNmodel(input_channels=4, output_channels=8, kernel_size=3, stride=1, padding=1)
    Cin, Cout, ksize, stride, padding = 4, 8, 3, 1, 1
    N, H, W = 2, 16, 16

    key = jax.random.PRNGKey(0)
    kx, kw, kb, kg, kbe = jax.random.split(key, 5)
    x = jax.random.normal(kx, (N, Cin, H, W), dtype=jnp.float32)
    conv_w = jax.random.normal(kw, (Cout, Cin, ksize, ksize), dtype=jnp.float32) * 0.1
    conv_b = jax.random.normal(kb, (Cout,), dtype=jnp.float32) * 0.1
    gamma = 1.0 + 0.1 * jax.random.normal(kg, (Cout,), dtype=jnp.float32)
    beta = 0.1 * jax.random.normal(kbe, (Cout,), dtype=jnp.float32)

    out = cnn_model_forward(x, conv_w, conv_b, gamma, beta,
                            ksize=ksize, stride=stride, padding=padding)
    out = jax.block_until_ready(out)

    ref = reference_forward(x, conv_w, conv_b, gamma, beta, stride, padding)
    assert out.shape == (N, Cout, H, W)
    assert jnp.max(jnp.abs(out - ref)) < 2e-3, "mismatch vs reference"

    print("KERNEL_OK")
</pallas_src>

<mosaic_0001>
module attributes {stable_mosaic.version = 11 : i64} {
  func.func @kernel(%arg0: i32, %arg1: memref<32x64xf32, #tpu.memory_space<vmem>>, %arg2: memref<3x64x128xf32, #tpu.memory_space<vmem>>, %arg3: memref<1x8xf32, #tpu.memory_space<vmem>>, %arg4: memref<1x8xf32, #tpu.memory_space<vmem>>, %arg5: memref<128x8xf32, #tpu.memory_space<vmem>>, %arg6: memref<8x128xf32, #tpu.memory_space<vmem>>, %arg7: memref<32x128xf32, #tpu.memory_space<vmem>>, %arg8: memref<32x64xf32, #tpu.memory_space<vmem>>) attributes {dimension_semantics = [#tpu.dimension_semantics<arbitrary>], iteration_bounds = array<i64: 1>, scalar_prefetch = 0 : i64, scratch_operands = 1 : i64, tpu.core_type = #tpu.core_type<tc>, window_params = [{pipeline_mode = #tpu.pipeline_mode<synchronous>, transform_indices = @transform_0, window_bounds = array<i64: 32, 64>}, {pipeline_mode = #tpu.pipeline_mode<synchronous>, transform_indices = @transform_1, window_bounds = array<i64: 3, 64, 128>}, {pipeline_mode = #tpu.pipeline_mode<synchronous>, transform_indices = @transform_2, window_bounds = array<i64: 1, 8>}, {pipeline_mode = #tpu.pipeline_mode<synchronous>, transform_indices = @transform_3, window_bounds = array<i64: 1, 8>}, {pipeline_mode = #tpu.pipeline_mode<synchronous>, transform_indices = @transform_4, window_bounds = array<i64: 128, 8>}, {pipeline_mode = #tpu.pipeline_mode<synchronous>, transform_indices = @transform_5, window_bounds = array<i64: 8, 128>}, {pipeline_mode = #tpu.pipeline_mode<synchronous>, transform_indices = @transform_6, window_bounds = array<i64: 32, 128>}]} {
    %cst = arith.constant 0.000000e+00 : f32
    %0 = vector.broadcast %cst : f32 to vector<32x128xf32>
    %c0 = arith.constant 0 : index
    %c0_0 = arith.constant 0 : index
    %1 = vector.load %arg7[%c0, %c0_0] : memref<32x128xf32, #tpu.memory_space<vmem>>, vector<32x128xf32>
    tpu.vector_store %arg7[%c0, %c0_0], %0 {strides = array<i32>} : memref<32x128xf32, #tpu.memory_space<vmem>>, vector<32x128xf32>,
    %cst_1 = arith.constant 0.000000e+00 : f32
    %2 = vector.broadcast %cst_1 : f32 to vector<32x64xf32>
    %c0_2 = arith.constant 0 : index
    %c0_3 = arith.constant 0 : index
    %3 = vector.load %arg8[%c0_2, %c0_3] : memref<32x64xf32, #tpu.memory_space<vmem>>, vector<32x64xf32>
    tpu.vector_store %arg8[%c0_2, %c0_3], %2 {strides = array<i32>} : memref<32x64xf32, #tpu.memory_space<vmem>>, vector<32x64xf32>,
    %c0_4 = arith.constant 0 : index
    %c0_5 = arith.constant 0 : index
    %4 = vector.load %arg1[%c0_4, %c0_5] : memref<32x64xf32, #tpu.memory_space<vmem>>, vector<15x64xf32>
    %c1 = arith.constant 1 : index
    %c0_6 = arith.constant 0 : index
    %5 = vector.load %arg8[%c1, %c0_6] : memref<32x64xf32, #tpu.memory_space<vmem>>, vector<15x64xf32>
    tpu.vector_store %arg8[%c1, %c0_6], %4 {strides = array<i32>} : memref<32x64xf32, #tpu.memory_space<vmem>>, vector<15x64xf32>,
    %c16 = arith.constant 16 : index
    %c0_7 = arith.constant 0 : index
    %6 = vector.load %arg1[%c16, %c0_7] : memref<32x64xf32, #tpu.memory_space<vmem>>, vector<15x64xf32>
    %c17 = arith.constant 17 : index
    %c0_8 = arith.constant 0 : index
    %7 = vector.load %arg8[%c17, %c0_8] : memref<32x64xf32, #tpu.memory_space<vmem>>, vector<15x64xf32>
    tpu.vector_store %arg8[%c17, %c0_8], %6 {strides = array<i32>} : memref<32x64xf32, #tpu.memory_space<vmem>>, vector<15x64xf32>,
    %c0_9 = arith.constant 0 : index
    %c0_10 = arith.constant 0 : index
    %8 = vector.load %arg7[%c0_9, %c0_10] : memref<32x128xf32, #tpu.memory_space<vmem>>, vector<32x128xf32>
    %c0_11 = arith.constant 0 : index
    %c0_12 = arith.constant 0 : index
    %9 = vector.load %arg8[%c0_11, %c0_12] : memref<32x64xf32, #tpu.memory_space<vmem>>, vector<32x64xf32>
    %c0_13 = arith.constant 0 : index
    %c0_14 = arith.constant 0 : index
    %c0_15 = arith.constant 0 : index
    %10 = vector.load %arg2[%c0_13, %c0_14, %c0_15] : memref<3x64x128xf32, #tpu.memory_space<vmem>>, vector<1x64x128xf32>
    %11 = vector.shape_cast %10 : vector<1x64x128xf32> to vector<64x128xf32>
    %cst_16 = arith.constant dense<0.000000e+00> : vector<32x128xf32>
    %12 = tpu.matmul %9, %11, %cst_16 {dimension_numbers = #tpu.dot_dimension_numbers<[1], [0], [0], [1], [0, 0, 1, 1], [], []>} : vector<32x64xf32>, vector<64x128xf32>, vector<32x128xf32> -> vector<32x128xf32>
    %13 = arith.addf %8, %12 : vector<32x128xf32>
    %c0_17 = arith.constant 0 : index
    %c0_18 = arith.constant 0 : index
    %14 = vector.load %arg7[%c0_17, %c0_18] : memref<32x128xf32, #tpu.memory_space<vmem>>, vector<32x128xf32>
    tpu.vector_store %arg7[%c0_17, %c0_18], %13 {strides = array<i32>} : memref<32x128xf32, #tpu.memory_space<vmem>>, vector<32x128xf32>,
    %c0_19 = arith.constant 0 : index
    %c0_20 = arith.constant 0 : index
    %15 = vector.load %arg1[%c0_19, %c0_20] : memref<32x64xf32, #tpu.memory_space<vmem>>, vector<16x64xf32>
    %c0_21 = arith.constant 0 : index
    %c0_22 = arith.constant 0 : index
    %16 = vector.load %arg8[%c0_21, %c0_22] : memref<32x64xf32, #tpu.memory_space<vmem>>, vector<16x64xf32>
    tpu.vector_store %arg8[%c0_21, %c0_22], %15 {strides = array<i32>} : memref<32x64xf32, #tpu.memory_space<vmem>>, vector<16x64xf32>,
    %c16_23 = arith.constant 16 : index
    %c0_24 = arith.constant 0 : index
    %17 = vector.load %arg1[%c16_23, %c0_24] : memref<32x64xf32, #tpu.memory_space<vmem>>, vector<16x64xf32>
    %c16_25 = arith.constant 16 : index
    %c0_26 = arith.constant 0 : index
    %18 = vector.load %arg8[%c16_25, %c0_26] : memref<32x64xf32, #tpu.memory_space<vmem>>, vector<16x64xf32>
    tpu.vector_store %arg8[%c16_25, %c0_26], %17 {strides = array<i32>} : memref<32x64xf32, #tpu.memory_space<vmem>>, vector<16x64xf32>,
    %c0_27 = arith.constant 0 : index
    %c0_28 = arith.constant 0 : index
    %19 = vector.load %arg7[%c0_27, %c0_28] : memref<32x128xf32, #tpu.memory_space<vmem>>, vector<32x128xf32>
    %c0_29 = arith.constant 0 : index
    %c0_30 = arith.constant 0 : index
    %20 = vector.load %arg8[%c0_29, %c0_30] : memref<32x64xf32, #tpu.memory_space<vmem>>, vector<32x64xf32>
    %c1_31 = arith.constant 1 : index
    %c0_32 = arith.constant 0 : index
    %c0_33 = arith.constant 0 : index
    %21 = vector.load %arg2[%c1_31, %c0_32, %c0_33] : memref<3x64x128xf32, #tpu.memory_space<vmem>>, vector<1x64x128xf32>
    %22 = vector.shape_cast %21 : vector<1x64x128xf32> to vector<64x128xf32>
    %cst_34 = arith.constant dense<0.000000e+00> : vector<32x128xf32>
    %23 = tpu.matmul %20, %22, %cst_34 {dimension_numbers = #tpu.dot_dimension_numbers<[1], [0], [0], [1], [0, 0, 1, 1], [], []>} : vector<32x64xf32>, vector<64x128xf32>, vector<32x128xf32> -> vector<32x128xf32>
    %24 = arith.addf %19, %23 : vector<32x128xf32>
    %c0_35 = arith.constant 0 : index
    %c0_36 = arith.constant 0 : index
    %25 = vector.load %arg7[%c0_35, %c0_36] : memref<32x128xf32, #tpu.memory_space<vmem>>, vector<32x128xf32>
    tpu.vector_store %arg7[%c0_35, %c0_36], %24 {strides = array<i32>} : memref<32x128xf32, #tpu.memory_space<vmem>>, vector<32x128xf32>,
    %cst_37 = arith.constant 0.000000e+00 : f32
    %26 = vector.broadcast %cst_37 : f32 to vector<32x64xf32>
    %c0_38 = arith.constant 0 : index
    %c0_39 = arith.constant 0 : index
    %27 = vector.load %arg8[%c0_38, %c0_39] : memref<32x64xf32, #tpu.memory_space<vmem>>, vector<32x64xf32>
    tpu.vector_store %arg8[%c0_38, %c0_39], %26 {strides = array<i32>} : memref<32x64xf32, #tpu.memory_space<vmem>>, vector<32x64xf32>,
    %c1_40 = arith.constant 1 : index
    %c0_41 = arith.constant 0 : index
    %28 = vector.load %arg1[%c1_40, %c0_41] : memref<32x64xf32, #tpu.memory_space<vmem>>, vector<15x64xf32>
    %c0_42 = arith.constant 0 : index
    %c0_43 = arith.constant 0 : index
    %29 = vector.load %arg8[%c0_42, %c0_43] : memref<32x64xf32, #tpu.memory_space<vmem>>, vector<15x64xf32>
    tpu.vector_store %arg8[%c0_42, %c0_43], %28 {strides = array<i32>} : memref<32x64xf32, #tpu.memory_space<vmem>>, vector<15x64xf32>,
    %c17_44 = arith.constant 17 : index
    %c0_45 = arith.constant 0 : index
    %30 = vector.load %arg1[%c17_44, %c0_45] : memref<32x64xf32, #tpu.memory_space<vmem>>, vector<15x64xf32>
    %c16_46 = arith.constant 16 : index
    %c0_47 = arith.constant 0 : index
    %31 = vector.load %arg8[%c16_46, %c0_47] : memref<32x64xf32, #tpu.memory_space<vmem>>, vector<15x64xf32>
    tpu.vector_store %arg8[%c16_46, %c0_47], %30 {strides = array<i32>} : memref<32x64xf32, #tpu.memory_space<vmem>>, vector<15x64xf32>,
    %c0_48 = arith.constant 0 : index
    %c0_49 = arith.constant 0 : index
    %32 = vector.load %arg7[%c0_48, %c0_49] : memref<32x128xf32, #tpu.memory_space<vmem>>, vector<32x128xf32>
    %c0_50 = arith.constant 0 : index
    %c0_51 = arith.constant 0 : index
    %33 = vector.load %arg8[%c0_50, %c0_51] : memref<32x64xf32, #tpu.memory_space<vmem>>, vector<32x64xf32>
    %c2 = arith.constant 2 : index
    %c0_52 = arith.constant 0 : index
    %c0_53 = arith.constant 0 : index
    %34 = vector.load %arg2[%c2, %c0_52, %c0_53] : memref<3x64x128xf32, #tpu.memory_space<vmem>>, vector<1x64x128xf32>
    %35 = vector.shape_cast %34 : vector<1x64x128xf32> to vector<64x128xf32>
    %cst_54 = arith.constant dense<0.000000e+00> : vector<32x128xf32>
    %36 = tpu.matmul %33, %35, %cst_54 {dimension_numbers = #tpu.dot_dimension_numbers<[1], [0], [0], [1], [0, 0, 1, 1], [], []>} : vector<32x64xf32>, vector<64x128xf32>, vector<32x128xf32> -> vector<32x128xf32>
    %37 = arith.addf %32, %36 : vector<32x128xf32>
    %c0_55 = arith.constant 0 : index
    %c0_56 = arith.constant 0 : index
    %38 = vector.load %arg7[%c0_55, %c0_56] : memref<32x128xf32, #tpu.memory_space<vmem>>, vector<32x128xf32>
    tpu.vector_store %arg7[%c0_55, %c0_56], %37 {strides = array<i32>} : memref<32x128xf32, #tpu.memory_space<vmem>>, vector<32x128xf32>,
    %c0_57 = arith.constant 0 : index
    %c0_58 = arith.constant 0 : index
    %39 = vector.load %arg7[%c0_57, %c0_58] : memref<32x128xf32, #tpu.memory_space<vmem>>, vector<32x128xf32>
    %cst_59 = arith.constant dense<0.000000e+00> : vector<128xf32>
    %40 = vector.multi_reduction <add>, %39, %cst_59 [0] : vector<32x128xf32> to vector<128xf32>
    %41 = vector.shape_cast %40 : vector<128xf32> to vector<1x128xf32>
    %c0_60 = arith.constant 0 : index
    %c0_61 = arith.constant 0 : index
    %42 = vector.load %arg5[%c0_60, %c0_61] : memref<128x8xf32, #tpu.memory_space<vmem>>, vector<128x8xf32>
    %cst_62 = arith.constant dense<0.000000e+00> : vector<1x8xf32>
    %43 = tpu.matmul %41, %42, %cst_62 {dimension_numbers = #tpu.dot_dimension_numbers<[1], [0], [0], [1], [0, 0, 1, 1], [], []>} : vector<1x128xf32>, vector<128x8xf32>, vector<1x8xf32> -> vector<1x8xf32>
    %cst_63 = arith.constant 0.001953125 : f32
    %44 = vector.broadcast %cst_63 : f32 to vector<1x8xf32>
    %45 = arith.mulf %43, %44 : vector<1x8xf32>
    %c0_64 = arith.constant 0 : index
    %c0_65 = arith.constant 0 : index
    %46 = vector.load %arg6[%c0_64, %c0_65] : memref<8x128xf32, #tpu.memory_space<vmem>>, vector<8x128xf32>
    %cst_66 = arith.constant dense<0.000000e+00> : vector<1x128xf32>
    %47 = tpu.matmul %45, %46, %cst_66 {dimension_numbers = #tpu.dot_dimension_numbers<[1], [0], [0], [1], [0, 0, 1, 1], [], []>} : vector<1x8xf32>, vector<8x128xf32>, vector<1x128xf32> -> vector<1x128xf32>
    %48 = vector.broadcast %47 : vector<1x128xf32> to vector<32x128xf32>
    %49 = arith.subf %39, %48 : vector<32x128xf32>
    %50 = arith.mulf %49, %49 : vector<32x128xf32>
    %cst_67 = arith.constant dense<0.000000e+00> : vector<128xf32>
    %51 = vector.multi_reduction <add>, %50, %cst_67 [0] : vector<32x128xf32> to vector<128xf32>
    %52 = vector.shape_cast %51 : vector<128xf32> to vector<1x128xf32>
    %c0_68 = arith.constant 0 : index
    %c0_69 = arith.constant 0 : index
    %53 = vector.load %arg5[%c0_68, %c0_69] : memref<128x8xf32, #tpu.memory_space<vmem>>, vector<128x8xf32>
    %cst_70 = arith.constant dense<0.000000e+00> : vector<1x8xf32>
    %54 = tpu.matmul %52, %53, %cst_70 {dimension_numbers = #tpu.dot_dimension_numbers<[1], [0], [0], [1], [0, 0, 1, 1], [], []>} : vector<1x128xf32>, vector<128x8xf32>, vector<1x8xf32> -> vector<1x8xf32>
    %cst_71 = arith.constant 0.001953125 : f32
    %55 = vector.broadcast %cst_71 : f32 to vector<1x8xf32>
    %56 = arith.mulf %54, %55 : vector<1x8xf32>
    %c0_72 = arith.constant 0 : index
    %c0_73 = arith.constant 0 : index
    %57 = vector.load %arg3[%c0_72, %c0_73] : memref<1x8xf32, #tpu.memory_space<vmem>>, vector<1x8xf32>
    %cst_74 = arith.constant 9.99999974E-6 : f32
    %58 = vector.broadcast %cst_74 : f32 to vector<1x8xf32>
    %59 = arith.addf %56, %58 : vector<1x8xf32>
    %60 = math.rsqrt %59 : vector<1x8xf32>
    %61 = arith.mulf %57, %60 : vector<1x8xf32>
    %c0_75 = arith.constant 0 : index
    %c0_76 = arith.constant 0 : index
    %62 = vector.load %arg6[%c0_75, %c0_76] : memref<8x128xf32, #tpu.memory_space<vmem>>, vector<8x128xf32>
    %cst_77 = arith.constant dense<0.000000e+00> : vector<1x128xf32>
    %63 = tpu.matmul %61, %62, %cst_77 {dimension_numbers = #tpu.dot_dimension_numbers<[1], [0], [0], [1], [0, 0, 1, 1], [], []>} : vector<1x8xf32>, vector<8x128xf32>, vector<1x128xf32> -> vector<1x128xf32>
    %c0_78 = arith.constant 0 : index
    %c0_79 = arith.constant 0 : index
    %64 = vector.load %arg4[%c0_78, %c0_79] : memref<1x8xf32, #tpu.memory_space<vmem>>, vector<1x8xf32>
    %c0_80 = arith.constant 0 : index
    %c0_81 = arith.constant 0 : index
    %65 = vector.load %arg6[%c0_80, %c0_81] : memref<8x128xf32, #tpu.memory_space<vmem>>, vector<8x128xf32>
    %cst_82 = arith.constant dense<0.000000e+00> : vector<1x128xf32>
    %66 = tpu.matmul %64, %65, %cst_82 {dimension_numbers = #tpu.dot_dimension_numbers<[1], [0], [0], [1], [0, 0, 1, 1], [], []>} : vector<1x8xf32>, vector<8x128xf32>, vector<1x128xf32> -> vector<1x128xf32>
    %67 = vector.broadcast %63 : vector<1x128xf32> to vector<32x128xf32>
    %68 = arith.mulf %49, %67 : vector<32x128xf32>
    %69 = vector.broadcast %66 : vector<1x128xf32> to vector<32x128xf32>
    %70 = arith.addf %68, %69 : vector<32x128xf32>
    %cst_83 = arith.constant 0.000000e+00 : f32
    %71 = vector.broadcast %cst_83 : f32 to vector<32x128xf32>
    %72 = arith.maximumf %70, %71 : vector<32x128xf32>
    %c0_84 = arith.constant 0 : index
    %c0_85 = arith.constant 0 : index
    %73 = vector.load %arg7[%c0_84, %c0_85] : memref<32x128xf32, #tpu.memory_space<vmem>>, vector<32x128xf32>
    tpu.vector_store %arg7[%c0_84, %c0_85], %72 {strides = array<i32>} : memref<32x128xf32, #tpu.memory_space<vmem>>, vector<32x128xf32>,
    return
  }
  func.func @transform_0(%arg0: i32) -> (i32, i32) {
    %c0_i32 = arith.constant 0 : i32
    %c0_i32_0 = arith.constant 0 : i32
    %c0_i32_1 = arith.constant 0 : i32
    return %c0_i32, %c0_i32_0 : i32, i32
  }
  func.func @transform_1(%arg0: i32) -> (i32, i32, i32) {
    %c0_i32 = arith.constant 0 : i32
    %c0_i32_0 = arith.constant 0 : i32
    %c0_i32_1 = arith.constant 0 : i32
    %c0_i32_2 = arith.constant 0 : i32
    return %c0_i32, %c0_i32_0, %c0_i32_1 : i32, i32, i32
  }
  func.func @transform_2(%arg0: i32) -> (i32, i32) {
    %c0_i32 = arith.constant 0 : i32
    %c0_i32_0 = arith.constant 0 : i32
    %c0_i32_1 = arith.constant 0 : i32
    return %c0_i32, %c0_i32_0 : i32, i32
  }
  func.func @transform_3(%arg0: i32) -> (i32, i32) {
    %c0_i32 = arith.constant 0 : i32
    %c0_i32_0 = arith.constant 0 : i32
    %c0_i32_1 = arith.constant 0 : i32
    return %c0_i32, %c0_i32_0 : i32, i32
  }
  func.func @transform_4(%arg0: i32) -> (i32, i32) {
    %c0_i32 = arith.constant 0 : i32
    %c0_i32_0 = arith.constant 0 : i32
    %c0_i32_1 = arith.constant 0 : i32
    return %c0_i32, %c0_i32_0 : i32, i32
  }
  func.func @transform_5(%arg0: i32) -> (i32, i32) {
    %c0_i32 = arith.constant 0 : i32
    %c0_i32_0 = arith.constant 0 : i32
    %c0_i32_1 = arith.constant 0 : i32
    return %c0_i32, %c0_i32_0 : i32, i32
  }
  func.func @transform_6(%arg0: i32) -> (i32, i32) {
    %c0_i32 = arith.constant 0 : i32
    %c0_i32_0 = arith.constant 0 : i32
    %c0_i32_1 = arith.constant 0 : i32
    return %c0_i32, %c0_i32_0 : i32, i32
  }
}

</mosaic_0001>

<llo_original>
// kernel: _forward.1
$region0: #{_forward.1}
  #allocation0 [shape = 'u32[]', space=smem, size = 0x4, offset = 0x4, fixed_abs, tag = 'smem constant byte address 0x4 - core index']
  #allocation1 [shape = 'u32[72,128]{1,0:T(1,128)}', space=vmem, size = 0x9000, scoped, tag = 'internal scratch']
  #allocation2 [shape = 'f32[32,64]{1,0:T(8,128)}', space=vmem, size = 0x4000, scoped, tag = 'scratch operand']
  %s0 = inlined_call_operand.vmem [shape: f32[32,64], index: 0, kind: input, shape index: {}]
  %s1 = inlined_call_operand.vmem [shape: f32[3,64,128], index: 1, kind: input, shape index: {}]
  %s2 = inlined_call_operand.vmem [shape: f32[1,8], index: 2, kind: input, shape index: {}]
  %s3 = inlined_call_operand.vmem [shape: f32[1,8], index: 3, kind: input, shape index: {}]
  %s4 = inlined_call_operand.vmem [shape: f32[128,8], index: 4, kind: input, shape index: {}]
  %s5 = inlined_call_operand.vmem [shape: f32[8,128], index: 5, kind: input, shape index: {}]
  %s6 = inlined_call_operand.vmem [shape: f32[32,128], index: 6, kind: output, shape index: {}]
  %s7 = sld [smem:[#allocation0]]
  $region34: #{_forward.1} parent=0
    _
  %s9 = ssub.s32 1, %s7
  %s10 = scalar_select 0, %s9, %s7
  // Predicated region
  $region2: #{_forward.1} parent=0 // pred_check
    _
  $region3: #{_forward.1} parent=0 // pred_check_branch
    %12 = sbr.rel (0) target = $region5
  $region4: #{_forward.1} parent=0 // pred_region
    _
  $region5: #{_forward.1} parent=0 // pred_fallthru
    _
  // Predicated region
  $region6: #{_forward.1} parent=0 // pred_check
    _
  $region7: #{_forward.1} parent=0 // pred_check_branch
    %14 = sbr.rel (0) target = $region9
  $region8: #{_forward.1} parent=0 // pred_region
    _
  $region9: #{_forward.1} parent=0 // pred_fallthru
    _
  // Predicated region
  $region10: #{_forward.1} parent=0 // pred_check
    _
  $region11: #{_forward.1} parent=0 // pred_check_branch
    %16 = sbr.rel (0) target = $region13
  $region12: #{_forward.1} parent=0 // pred_region
    _
  $region13: #{_forward.1} parent=0 // pred_fallthru
    _
  // Predicated region
  $region14: #{_forward.1} parent=0 // pred_check
    _
  $region15: #{_forward.1} parent=0 // pred_check_branch
    %18 = sbr.rel (0) target = $region17
  $region16: #{_forward.1} parent=0 // pred_region
    _
  $region17: #{_forward.1} parent=0 // pred_fallthru
    _
  // Predicated region
  $region18: #{_forward.1} parent=0 // pred_check
    _
  $region19: #{_forward.1} parent=0 // pred_check_branch
    %20 = sbr.rel (0) target = $region21
  $region20: #{_forward.1} parent=0 // pred_region
    _
  $region21: #{_forward.1} parent=0 // pred_fallthru
    _
  // Predicated region
  $region22: #{_forward.1} parent=0 // pred_check
    _
  $region23: #{_forward.1} parent=0 // pred_check_branch
    %22 = sbr.rel (0) target = $region25
  $region24: #{_forward.1} parent=0 // pred_region
    _
  $region25: #{_forward.1} parent=0 // pred_fallthru
    _
  %23 = vst [vmem:[%s6] sm:$0xff] 0.0
  %24 = vst [vmem:[%s6 + $0x8] sm:$0xff] 0.0
  %25 = vst [vmem:[%s6 + $0x10] sm:$0xff] 0.0
  %26 = vst [vmem:[%s6 + $0x18] sm:$0xff] 0.0
  %vm27 = vcmask 523264
  %28 = vst.msk [vmem:[#allocation2] sm:$0xff] %vm27, 0.0
  %29 = vst.msk [vmem:[#allocation2 + $0x8] sm:$0xff] %vm27, 0.0
  %30 = vst.msk [vmem:[#allocation2 + $0x10] sm:$0xff] %vm27, 0.0
  %31 = vst.msk [vmem:[#allocation2 + $0x18] sm:$0xff] %vm27, 0.0
  %v32 = vld [vmem:[%s0] sm:$0xff]
  %v33 = vld [vmem:[%s0 + $0x8] sm:$0x7f]
  %34 = vst.msk [vmem:[#allocation2 + $0x1] sm:$0xff] %vm27, %v32
  %vm35 = vcmask 522240
  %36 = vst.msk [vmem:[#allocation2 + $0x9] sm:$0x7f] %vm35, %v33
  %v37 = vld [vmem:[%s0 + $0x10] sm:$0xff]
  %v38 = vld [vmem:[%s0 + $0x18] sm:$0x7f]
  %39 = vst.msk [vmem:[#allocation2 + $0x11] sm:$0xff] %vm27, %v37
  %40 = vst.msk [vmem:[#allocation2 + $0x19] sm:$0x7f] %vm35, %v38
  %v41 = vld [vmem:[%s6] sm:$0xff]
  %v42 = vld [vmem:[%s6 + $0x8] sm:$0xff]
  %v43 = vld [vmem:[%s6 + $0x10] sm:$0xff]
  %v44 = vld [vmem:[%s6 + $0x18] sm:$0xff]
  %v45 = vld [vmem:[#allocation2] sm:$0xff]
  %v46 = vld [vmem:[#allocation2 + $0x8] sm:$0xff]
  %v47 = vld [vmem:[#allocation2 + $0x10] sm:$0xff]
  %v48 = vld [vmem:[#allocation2 + $0x18] sm:$0xff]
  %v49 = vld [vmem:[%s1] sm:$0xff]
  %v50 = vld [vmem:[%s1 + $0x8] sm:$0xff]
  %v51 = vld [vmem:[%s1 + $0x10] sm:$0xff]
  %v52 = vld [vmem:[%s1 + $0x18] sm:$0xff]
  %v53 = vld [vmem:[%s1 + $0x20] sm:$0xff]
  %v54 = vld [vmem:[%s1 + $0x28] sm:$0xff]
  %v55 = vld [vmem:[%s1 + $0x30] sm:$0xff]
  %v56 = vld [vmem:[%s1 + $0x38] sm:$0xff]
  %v58 = vsel %vm27, %v45, 0
  %v61 = vsel %vm27, %v46, 0
  %v64 = vsel %vm27, %v47, 0
  %v67 = vsel %vm27, %v48, 0
  %69 = vmatpush.msra.mxu0 0.0
  %70 = vmatpush.msra.mxu0 0.0
  %71 = vmatpush.msra.mxu0 0.0
  %72 = vmatpush.msra.mxu0 0.0
  %73 = vmatpush.msra.mxu0 0.0
  %74 = vmatpush.msra.mxu0 0.0
  %75 = vmatpush.msra.mxu0 0.0
  %76 = vmatpush.msra.mxu0 0.0
  %77 = vmatpush.msra.mxu0 %v56
  %78 = vmatpush.msra.mxu0 %v55
  %79 = vmatpush.msra.mxu0 %v54
  %80 = vmatpush.msra.mxu0 %v53
  %81 = vmatpush.msra.mxu0 %v52
  %82 = vmatpush.msra.mxu0 %v51
  %83 = vmatpush.msra.mxu0 %v50
  %84 = vmatpush.msra.mxu0 %v49
  %85 = vmatmul.f32.gmra.mxu0 %v58
  %v86 = vpop.f32.mrf.mxu0
  %v87 = vadd.f32 0.0, %v86
  %88 = vmatmul.f32.gmra.mxu0 %v61
  %v89 = vpop.f32.mrf.mxu0
  %v90 = vadd.f32 0.0, %v89
  %91 = vmatmul.f32.gmra.mxu0 %v64
  %v92 = vpop.f32.mrf.mxu0
  %v93 = vadd.f32 0.0, %v92
  %94 = vmatmul.f32.gmra.mxu0 %v67
  %v95 = vpop.f32.mrf.mxu0
  %v96 = vadd.f32 0.0, %v95
  %97 = vdwg.mxu0
  %v98 = vadd.f32 %v41, %v87
  %v99 = vadd.f32 %v42, %v90
  %v100 = vadd.f32 %v43, %v93
  %v101 = vadd.f32 %v44, %v96
  %102 = vst [vmem:[%s6] sm:$0xff] %v98
  %103 = vst [vmem:[%s6 + $0x8] sm:$0xff] %v99
  %104 = vst [vmem:[%s6 + $0x10] sm:$0xff] %v100
  %105 = vst [vmem:[%s6 + $0x18] sm:$0xff] %v101
  %v106 = vld [vmem:[%s0] sm:$0xff]
  %v107 = vld [vmem:[%s0 + $0x8] sm:$0xff]
  %108 = vst.msk [vmem:[#allocation2] sm:$0xff] %vm27, %v106
  %109 = vst.msk [vmem:[#allocation2 + $0x8] sm:$0xff] %vm27, %v107
  %v110 = vld [vmem:[%s0 + $0x10] sm:$0xff]
  %v111 = vld [vmem:[%s0 + $0x18] sm:$0xff]
  %112 = vst.msk [vmem:[#allocation2 + $0x10] sm:$0xff] %vm27, %v110
  %113 = vst.msk [vmem:[#allocation2 + $0x18] sm:$0xff] %vm27, %v111
  %v114 = vld [vmem:[%s6] sm:$0xff]
  %v115 = vld [vmem:[%s6 + $0x8] sm:$0xff]
  %v116 = vld [vmem:[%s6 + $0x10] sm:$0xff]
  %v117 = vld [vmem:[%s6 + $0x18] sm:$0xff]
  %v118 = vld [vmem:[#allocation2] sm:$0xff]
  %v119 = vld [vmem:[#allocation2 + $0x8] sm:$0xff]
  %v120 = vld [vmem:[#allocation2 + $0x10] sm:$0xff]
  %v121 = vld [vmem:[#allocation2 + $0x18] sm:$0xff]
  %s122 = scalar_lea.vmem %s1, 64
  %v123 = vld [vmem:[%s122] sm:$0xff]
  %v124 = vld [vmem:[%s122 + $0x8] sm:$0xff]
  %v125 = vld [vmem:[%s122 + $0x10] sm:$0xff]
  %v126 = vld [vmem:[%s122 + $0x18] sm:$0xff]
  %v127 = vld [vmem:[%s122 + $0x20] sm:$0xff]
  %v128 = vld [vmem:[%s122 + $0x28] sm:$0xff]
  %v129 = vld [vmem:[%s122 + $0x30] sm:$0xff]
  %v130 = vld [vmem:[%s122 + $0x38] sm:$0xff]
  %v132 = vsel %vm27, %v118, 0
  %v135 = vsel %vm27, %v119, 0
  %v138 = vsel %vm27, %v120, 0
  %v141 = vsel %vm27, %v121, 0
  %143 = vmatpush.msra.mxu0 0.0
  %144 = vmatpush.msra.mxu0 0.0
  %145 = vmatpush.msra.mxu0 0.0
  %146 = vmatpush.msra.mxu0 0.0
  %147 = vmatpush.msra.mxu0 0.0
  %148 = vmatpush.msra.mxu0 0.0
  %149 = vmatpush.msra.mxu0 0.0
  %150 = vmatpush.msra.mxu0 0.0
  %151 = vmatpush.msra.mxu0 %v130
  %152 = vmatpush.msra.mxu0 %v129
  %153 = vmatpush.msra.mxu0 %v128
  %154 = vmatpush.msra.mxu0 %v127
  %155 = vmatpush.msra.mxu0 %v126
  %156 = vmatpush.msra.mxu0 %v125
  %157 = vmatpush.msra.mxu0 %v124
  %158 = vmatpush.msra.mxu0 %v123
  %159 = vmatmul.f32.gmra.mxu0 %v132
  %v160 = vpop.f32.mrf.mxu0
  %v161 = vadd.f32 0.0, %v160
  %162 = vmatmul.f32.gmra.mxu0 %v135
  %v163 = vpop.f32.mrf.mxu0
  %v164 = vadd.f32 0.0, %v163
  %165 = vmatmul.f32.gmra.mxu0 %v138
  %v166 = vpop.f32.mrf.mxu0
  %v167 = vadd.f32 0.0, %v166
  %168 = vmatmul.f32.gmra.mxu0 %v141
  %v169 = vpop.f32.mrf.mxu0
  %v170 = vadd.f32 0.0, %v169
  %171 = vdwg.mxu0
  %v172 = vadd.f32 %v114, %v161
  %v173 = vadd.f32 %v115, %v164
  %v174 = vadd.f32 %v116, %v167
  %v175 = vadd.f32 %v117, %v170
  %176 = vst [vmem:[%s6] sm:$0xff] %v172
  %177 = vst [vmem:[%s6 + $0x8] sm:$0xff] %v173
  %178 = vst [vmem:[%s6 + $0x10] sm:$0xff] %v174
  %179 = vst [vmem:[%s6 + $0x18] sm:$0xff] %v175
  %180 = vst.msk [vmem:[#allocation2] sm:$0xff] %vm27, 0.0
  %181 = vst.msk [vmem:[#allocation2 + $0x8] sm:$0xff] %vm27, 0.0
  %182 = vst.msk [vmem:[#allocation2 + $0x10] sm:$0xff] %vm27, 0.0
  %183 = vst.msk [vmem:[#allocation2 + $0x18] sm:$0xff] %vm27, 0.0
  %v184 = vld [vmem:[%s0 + $0x1] sm:$0xff]
  %v185 = vld [vmem:[%s0 + $0x9] sm:$0x7f]
  %186 = vst.msk [vmem:[#allocation2] sm:$0xff] %vm27, %v184
  %187 = vst.msk [vmem:[#allocation2 + $0x8] sm:$0x7f] %vm35, %v185
  %v188 = vld [vmem:[%s0 + $0x11] sm:$0xff]
  %v189 = vld [vmem:[%s0 + $0x19] sm:$0x7f]
  %190 = vst.msk [vmem:[#allocation2 + $0x10] sm:$0xff] %vm27, %v188
  %191 = vst.msk [vmem:[#allocation2 + $0x18] sm:$0x7f] %vm35, %v189
  %v192 = vld [vmem:[%s6] sm:$0xff]
  %v193 = vld [vmem:[%s6 + $0x8] sm:$0xff]
  %v194 = vld [vmem:[%s6 + $0x10] sm:$0xff]
  %v195 = vld [vmem:[%s6 + $0x18] sm:$0xff]
  %v196 = vld [vmem:[#allocation2] sm:$0xff]
  %v197 = vld [vmem:[#allocation2 + $0x8] sm:$0xff]
  %v198 = vld [vmem:[#allocation2 + $0x10] sm:$0xff]
  %v199 = vld [vmem:[#allocation2 + $0x18] sm:$0xff]
  %s200 = scalar_lea.vmem %s1, 128
  %v201 = vld [vmem:[%s200] sm:$0xff]
  %v202 = vld [vmem:[%s200 + $0x8] sm:$0xff]
  %v203 = vld [vmem:[%s200 + $0x10] sm:$0xff]
  %v204 = vld [vmem:[%s200 + $0x18] sm:$0xff]
  %v205 = vld [vmem:[%s200 + $0x20] sm:$0xff]
  %v206 = vld [vmem:[%s200 + $0x28] sm:$0xff]
  %v207 = vld [vmem:[%s200 + $0x30] sm:$0xff]
  %v208 = vld [vmem:[%s200 + $0x38] sm:$0xff]
  %v210 = vsel %vm27, %v196, 0
  %v213 = vsel %vm27, %v197, 0
  %v216 = vsel %vm27, %v198, 0
  %v219 = vsel %vm27, %v199, 0
  %221 = vmatpush.msra.mxu0 0.0
  %222 = vmatpush.msra.mxu0 0.0
  %223 = vmatpush.msra.mxu0 0.0
  %224 = vmatpush.msra.mxu0 0.0
  %225 = vmatpush.msra.mxu0 0.0
  %226 = vmatpush.msra.mxu0 0.0
  %227 = vmatpush.msra.mxu0 0.0
  %228 = vmatpush.msra.mxu0 0.0
  %229 = vmatpush.msra.mxu0 %v208
  %230 = vmatpush.msra.mxu0 %v207
  %231 = vmatpush.msra.mxu0 %v206
  %232 = vmatpush.msra.mxu0 %v205
  %233 = vmatpush.msra.mxu0 %v204
  %234 = vmatpush.msra.mxu0 %v203
  %235 = vmatpush.msra.mxu0 %v202
  %236 = vmatpush.msra.mxu0 %v201
  %237 = vmatmul.f32.gmra.mxu0 %v210
  %v238 = vpop.f32.mrf.mxu0
  %v239 = vadd.f32 0.0, %v238
  %240 = vmatmul.f32.gmra.mxu0 %v213
  %v241 = vpop.f32.mrf.mxu0
  %v242 = vadd.f32 0.0, %v241
  %243 = vmatmul.f32.gmra.mxu0 %v216
  %v244 = vpop.f32.mrf.mxu0
  %v245 = vadd.f32 0.0, %v244
  %246 = vmatmul.f32.gmra.mxu0 %v219
  %v247 = vpop.f32.mrf.mxu0
  %v248 = vadd.f32 0.0, %v247
  %249 = vdwg.mxu0
  %v250 = vadd.f32 %v192, %v239
  %v251 = vadd.f32 %v193, %v242
  %v252 = vadd.f32 %v194, %v245
  %v253 = vadd.f32 %v195, %v248
  %254 = vst [vmem:[%s6] sm:$0xff] %v250
  %255 = vst [vmem:[%s6 + $0x8] sm:$0xff] %v251
  %256 = vst [vmem:[%s6 + $0x10] sm:$0xff] %v252
  %257 = vst [vmem:[%s6 + $0x18] sm:$0xff] %v253
  %v258 = vld [vmem:[%s6] sm:$0xff]
  %v259 = vld [vmem:[%s6 + $0x8] sm:$0xff]
  %v260 = vld [vmem:[%s6 + $0x10] sm:$0xff]
  %v261 = vld [vmem:[%s6 + $0x18] sm:$0xff]
  %v262 = vadd.f32 %v258, %v259
  %v263 = vadd.f32 %v262, %v260
  %v264 = vadd.f32 %v263, %v261
  %v265 = vrot.slane %v264, 4
  %v266 = vadd.f32 %v264, %v265
  %v267 = vrot.slane %v266, 2
  %v268 = vadd.f32 %v266, %v267
  %v269 = vrot.slane %v268, 1
  %v270 = vadd.f32 %v268, %v269
  %v271 = vld [vmem:[%s4] sm:$0xff]
  %v272 = vld [vmem:[%s4 + $0x8] sm:$0xff]
  %v273 = vld [vmem:[%s4 + $0x10] sm:$0xff]
  %v274 = vld [vmem:[%s4 + $0x18] sm:$0xff]
  %v275 = vld [vmem:[%s4 + $0x20] sm:$0xff]
  %v276 = vld [vmem:[%s4 + $0x28] sm:$0xff]
  %v277 = vld [vmem:[%s4 + $0x30] sm:$0xff]
  %v278 = vld [vmem:[%s4 + $0x38] sm:$0xff]
  %v279 = vld [vmem:[%s4 + $0x40] sm:$0xff]
  %v280 = vld [vmem:[%s4 + $0x48] sm:$0xff]
  %v281 = vld [vmem:[%s4 + $0x50] sm:$0xff]
  %v282 = vld [vmem:[%s4 + $0x58] sm:$0xff]
  %v283 = vld [vmem:[%s4 + $0x60] sm:$0xff]
  %v284 = vld [vmem:[%s4 + $0x68] sm:$0xff]
  %v285 = vld [vmem:[%s4 + $0x70] sm:$0xff]
  %v286 = vld [vmem:[%s4 + $0x78] sm:$0xff]
  %287 = vmatpush.msra.mxu0 %v286
  %288 = vmatpush.msra.mxu0 %v285
  %289 = vmatpush.msra.mxu0 %v284
  %290 = vmatpush.msra.mxu0 %v283
  %291 = vmatpush.msra.mxu0 %v282
  %292 = vmatpush.msra.mxu0 %v281
  %293 = vmatpush.msra.mxu0 %v280
  %294 = vmatpush.msra.mxu0 %v279
  %295 = vmatpush.msra.mxu0 %v278
  %296 = vmatpush.msra.mxu0 %v277
  %297 = vmatpush.msra.mxu0 %v276
  %298 = vmatpush.msra.mxu0 %v275
  %299 = vmatpush.msra.mxu0 %v274
  %300 = vmatpush.msra.mxu0 %v273
  %301 = vmatpush.msra.mxu0 %v272
  %302 = vmatpush.msra.mxu0 %v271
  %303 = vmatmul.f32.gmra.mxu0 %v270
  %v304 = vpop.f32.mrf.mxu0
  %v305 = vadd.f32 0.0, %v304
  %306 = vdwg.mxu0
  %v307 = vmul.f32 %v305, 0.001953125
  %v308 = vld [vmem:[%s5] sm:$0xff]
  %vm309 = vcmask 64512
  %v311 = vsel %vm309, %v307, 0
  %313 = vmatpush.msra.mxu0 0.0
  %314 = vmatpush.msra.mxu0 0.0
  %315 = vmatpush.msra.mxu0 0.0
  %316 = vmatpush.msra.mxu0 0.0
  %317 = vmatpush.msra.mxu0 0.0
  %318 = vmatpush.msra.mxu0 0.0
  %319 = vmatpush.msra.mxu0 0.0
  %320 = vmatpush.msra.mxu0 0.0
  %321 = vmatpush.msra.mxu0 0.0
  %322 = vmatpush.msra.mxu0 0.0
  %323 = vmatpush.msra.mxu0 0.0
  %324 = vmatpush.msra.mxu0 0.0
  %325 = vmatpush.msra.mxu0 0.0
  %326 = vmatpush.msra.mxu0 0.0
  %327 = vmatpush.msra.mxu0 0.0
  %328 = vmatpush.msra.mxu0 %v308
  %329 = vmatmul.f32.gmra.mxu0 %v311
  %v330 = vpop.f32.mrf.mxu0
  %v331 = vadd.f32 0.0, %v330
  %332 = vdwg.mxu0
  %v333 = vperm.slane %v331, 0
  %v334 = vsub.f32 %v258, %v333
  %v335 = vsub.f32 %v259, %v333
  %v336 = vsub.f32 %v260, %v333
  %v337 = vsub.f32 %v261, %v333
  %v338 = vmul.f32 %v334, %v334
  %v339 = vmul.f32 %v335, %v335
  %v340 = vmul.f32 %v336, %v336
  %v341 = vmul.f32 %v337, %v337
  %v342 = vadd.f32 %v338, %v339
  %v343 = vadd.f32 %v342, %v340
  %v344 = vadd.f32 %v343, %v341
  %v345 = vrot.slane %v344, 4
  %v346 = vadd.f32 %v344, %v345
  %v347 = vrot.slane %v346, 2
  %v348 = vadd.f32 %v346, %v347
  %v349 = vrot.slane %v348, 1
  %v350 = vadd.f32 %v348, %v349
  %351 = vmatpush.msra.mxu0 %v286
  %352 = vmatpush.msra.mxu0 %v285
  %353 = vmatpush.msra.mxu0 %v284
  %354 = vmatpush.msra.mxu0 %v283
  %355 = vmatpush.msra.mxu0 %v282
  %356 = vmatpush.msra.mxu0 %v281
  %357 = vmatpush.msra.mxu0 %v280
  %358 = vmatpush.msra.mxu0 %v279
  %359 = vmatpush.msra.mxu0 %v278
  %360 = vmatpush.msra.mxu0 %v277
  %361 = vmatpush.msra.mxu0 %v276
  %362 = vmatpush.msra.mxu0 %v275
  %363 = vmatpush.msra.mxu0 %v274
  %364 = vmatpush.msra.mxu0 %v273
  %365 = vmatpush.msra.mxu0 %v272
  %366 = vmatpush.msra.mxu0 %v271
  %367 = vmatmul.f32.gmra.mxu0 %v350
  %v368 = vpop.f32.mrf.mxu0
  %v369 = vadd.f32 0.0, %v368
  %370 = vdwg.mxu0
  %v371 = vmul.f32 %v369, 0.001953125
  %v372 = vld [vmem:[%s2] sm:$0x1]
  %v373 = vadd.f32 %v371, 1e-05
  %v374 = vrsqrt.pop %v373
  %v375 = vmul.f32 %v374, %v373
  %v376 = vmul.f32 %v375, %v374
  %v377 = vmul.f32 0.5, %v376
  %v378 = vsub.f32 1.5, %v377
  %v379 = vmul.f32 %v374, %v378
  %vm380 = vweird.f32 %v373
  %vm381 = vweird.f32 %v374
  %vm382 = vmor %vm380, %vm381
  %v383 = vsel %vm382, %v374, %v379
  %v384 = vmul.f32 %v372, %v383
  %v386 = vsel %vm309, %v384, 0
  %388 = vmatpush.msra.mxu0 0.0
  %389 = vmatpush.msra.mxu0 0.0
  %390 = vmatpush.msra.mxu0 0.0
  %391 = vmatpush.msra.mxu0 0.0
  %392 = vmatpush.msra.mxu0 0.0
  %393 = vmatpush.msra.mxu0 0.0
  %394 = vmatpush.msra.mxu0 0.0
  %395 = vmatpush.msra.mxu0 0.0
  %396 = vmatpush.msra.mxu0 0.0
  %397 = vmatpush.msra.mxu0 0.0
  %398 = vmatpush.msra.mxu0 0.0
  %399 = vmatpush.msra.mxu0 0.0
  %400 = vmatpush.msra.mxu0 0.0
  %401 = vmatpush.msra.mxu0 0.0
  %402 = vmatpush.msra.mxu0 0.0
  %403 = vmatpush.msra.mxu0 %v308
  %404 = vmatmul.f32.gmra.mxu0 %v386
  %v405 = vpop.f32.mrf.mxu0
  %v406 = vadd.f32 0.0, %v405
  %407 = vdwg.mxu0
  %v408 = vld [vmem:[%s3] sm:$0x1]
  %v410 = vsel %vm309, %v408, 0
  %412 = vmatpush.msra.mxu0 0.0
  %413 = vmatpush.msra.mxu0 0.0
  %414 = vmatpush.msra.mxu0 0.0
  %415 = vmatpush.msra.mxu0 0.0
  %416 = vmatpush.msra.mxu0 0.0
  %417 = vmatpush.msra.mxu0 0.0
  %418 = vmatpush.msra.mxu0 0.0
  %419 = vmatpush.msra.mxu0 0.0
  %420 = vmatpush.msra.mxu0 0.0
  %421 = vmatpush.msra.mxu0 0.0
  %422 = vmatpush.msra.mxu0 0.0
  %423 = vmatpush.msra.mxu0 0.0
  %424 = vmatpush.msra.mxu0 0.0
  %425 = vmatpush.msra.mxu0 0.0
  %426 = vmatpush.msra.mxu0 0.0
  %427 = vmatpush.msra.mxu0 %v308
  %428 = vmatmul.f32.gmra.mxu0 %v410
  %v429 = vpop.f32.mrf.mxu0
  %v430 = vadd.f32 0.0, %v429
  %431 = vdwg.mxu0
  %v432 = vperm.slane %v406, 0
  %v433 = vmul.f32 %v334, %v432
  %v434 = vmul.f32 %v335, %v432
  %v435 = vmul.f32 %v336, %v432
  %v436 = vmul.f32 %v337, %v432
  %v437 = vperm.slane %v430, 0
  %v438 = vadd.f32 %v433, %v437
  %v439 = vadd.f32 %v434, %v437
  %v440 = vadd.f32 %v435, %v437
  %v441 = vadd.f32 %v436, %v437
  %v442 = vmax.f32 %v438, 0.0
  %v443 = vmax.f32 %v439, 0.0
  %v444 = vmax.f32 %v440, 0.0
  %v445 = vmax.f32 %v441, 0.0
  %446 = vst [vmem:[%s6] sm:$0xff] %v442
  %447 = vst [vmem:[%s6 + $0x8] sm:$0xff] %v443
  %448 = vst [vmem:[%s6 + $0x10] sm:$0xff] %v444
  %449 = vst [vmem:[%s6 + $0x18] sm:$0xff] %v445
  // Predicated region
  $region26: #{_forward.1} parent=0 // pred_check
    _
  $region27: #{_forward.1} parent=0 // pred_check_branch
    %451 = sbr.rel (0) target = $region29
  $region28: #{_forward.1} parent=0 // pred_region
    _
  $region29: #{_forward.1} parent=0 // pred_fallthru
    _
  // Predicated region
  $region30: #{_forward.1} parent=0 // pred_check
    _
  $region31: #{_forward.1} parent=0 // pred_check_branch
    %453 = sbr.rel (0) target = $region33
  $region32: #{_forward.1} parent=0 // pred_region
    _
  $region33: #{_forward.1} parent=0 // pred_fallthru
    _

</llo_original>
